<compile_context>
chip_gen: v7x
topology: tpu7x:2x2x1
jax: 0.10.0
libtpu: 0.0.40
codegen_flags: <defaults>
</compile_context>

<pallas_src>
from functools import partial

import jax
import jax.numpy as jnp
from jax.experimental import pallas as pl
from jax.experimental.pallas import tpu as pltpu

LANE = 128


def _round_up(n: int, m: int) -> int:
    return (n + m - 1) // m * m


# ----------------------------- Pallas kernel ---------------------------------
def _reg_head_kernel(x_ref, w1_ref, shift_ref, w2_ref, b2_ref, o_ref, *, out_dim):
    # Linear(D -> Hp) on the MXU. BatchNorm scale and the Linear bias are
    # pre-folded into W1'/shift at load time. bf16 operands, f32 accumulation.
    h = jnp.dot(x_ref[...].astype(jnp.bfloat16), w1_ref[...],
                preferred_element_type=jnp.float32)
    # BatchNorm shift + ReLU (Dropout = identity in eval). Keep the elementwise
    # epilogue in f32 (v5e VPU/EUP have no bf16 path).
    h = jnp.maximum(h + shift_ref[...], 0.0)
    # Linear(Hp -> Op) on the MXU with the 128-wide padded W2, then slice to the
    # real 4 output columns BEFORE bias/sigmoid/store so only (tb, 4) is written
    # back to HBM (no padded writeback, no wrapper slice copy).
    y = jnp.dot(h.astype(jnp.bfloat16), w2_ref[...],
                preferred_element_type=jnp.float32)
    y = y[:, :out_dim] + b2_ref[...]
    o_ref[...] = jax.nn.sigmoid(y)


# ----------------------- one-time parameter folding ---------------------------
def prepare_reg_head_params(w1, b1, bn_gamma, bn_beta, bn_mean, bn_var, w2, b2,
                            eps: float = 1e-5):
    """Fold BatchNorm (running stats) and the first Linear's bias into W1/shift,
    cast weights to bf16 MXU operands, and zero-pad the hidden/W2-output dims to
    lane-dense multiples of 128.

    Call ONCE at model-load time; the result is reused for every forward so the
    per-call wrapper does no elementwise prep work.
      bn(x @ W1 + b1) == x @ (W1 * scale) + shift
      scale = gamma * rsqrt(var + eps);  shift = beta + (b1 - mean) * scale
    """
    D, H = w1.shape
    O = w2.shape[1]
    Hp = _round_up(H, LANE)
    Op = _round_up(O, LANE)

    inv_std = jax.lax.rsqrt(bn_var + eps)
    scale = bn_gamma * inv_std                       # [H]
    shift = bn_beta + (b1 - bn_mean) * scale         # [H]
    w1_folded = w1 * scale[None, :]                  # exact fold of BN scale

    # Padded hidden cols: W1' cols = 0, shift = 0 -> relu(0) = 0 -> multiplied by
    # zero rows of W2 -> no effect.  Padded W2 output cols are sliced away in-kernel.
    w1_p = jnp.zeros((D, Hp), jnp.bfloat16).at[:, :H].set(
        w1_folded.astype(jnp.bfloat16))
    shift_p = jnp.zeros((1, Hp), jnp.float32).at[:, :H].set(shift)
    w2_p = jnp.zeros((Hp, Op), jnp.bfloat16).at[:H, :O].set(w2.astype(jnp.bfloat16))
    b2_p = b2.reshape(1, O).astype(jnp.float32)
    return (w1_p, shift_p, w2_p, b2_p), O


# ------------------------------ forward wrapper --------------------------------
@partial(jax.jit, static_argnames=("out_dim", "block_b"))
def reg_head_pallas(x, params, *, out_dim: int = 4, block_b: int = 512):
    """Eval-mode reg head: sigmoid(relu(bn(x @ W1 + b1)) @ W2 + b2).

    x:      [B, D] float32 (decoder reg_token)
    params: output of prepare_reg_head_params (BN/bias folded, bf16, padded)
    returns [B, out_dim] float32
    """
    w1_p, shift_p, w2_p, b2_p = params
    B, D = x.shape
    Hp = w1_p.shape[1]
    Op = w2_p.shape[1]

    # Batch tile: up to `block_b` rows per grid step (sublane-aligned). No jnp.pad
    # of x — Pallas masks the partial last block; nudge the step count to be even
    # when > 1 so v7x megacore sharding is balanced.
    tb = min(block_b, _round_up(B, 8))
    steps = pl.cdiv(B, tb)
    if steps > 1 and steps % 2 == 1:
        tb = _round_up(pl.cdiv(B, steps + 1), 8)
        steps = pl.cdiv(B, tb)

    out = pl.pallas_call(
        partial(_reg_head_kernel, out_dim=out_dim),
        out_shape=jax.ShapeDtypeStruct((B, out_dim), jnp.float32),
        grid=(steps,),
        in_specs=[
            pl.BlockSpec((tb, D), lambda i: (i, 0)),     # x rows stream over batch
            pl.BlockSpec((D, Hp), lambda i: (0, 0)),     # weights stay resident
            pl.BlockSpec((1, Hp), lambda i: (0, 0)),
            pl.BlockSpec((Hp, Op), lambda i: (0, 0)),
            pl.BlockSpec((1, out_dim), lambda i: (0, 0)),
        ],
        out_specs=pl.BlockSpec((tb, out_dim), lambda i: (i, 0)),  # unpadded store
        compiler_params=pltpu.CompilerParams(
            dimension_semantics=("parallel",),           # megacore-shardable on v7x
            vmem_limit_bytes=32 << 20,
        ),
    )(x, w1_p, shift_p, w2_p, b2_p)

    return out


# ------------------------------ reference --------------------------------------
def reg_head_ref(x, w1, b1, bn_gamma, bn_beta, bn_mean, bn_var, w2, b2,
                 eps: float = 1e-5):
    h = x @ w1 + b1
    h = (h - bn_mean) / jnp.sqrt(bn_var + eps) * bn_gamma + bn_beta
    h = jnp.maximum(h, 0.0)
    y = h @ w2 + b2
    return jax.nn.sigmoid(y)


# -------------------------------- main ------------------------------------------
if __name__ == "__main__":
    # Small shapes consistent with the module:
    #   embed_dim (decoder output / reg_head input) = 32
    #   mlp_hidden_dim = 64, output_dim = 4, batch = 8
    B, D, H, O = 8, 32, 64, 4

    key = jax.random.PRNGKey(0)
    k_x, k_w1, k_b1, k_w2, k_b2, k_m, k_v = jax.random.split(key, 7)

    # Stand-in for the decoder output reg_token [B, embed_dim].
    reg_token = jax.random.normal(k_x, (B, D), dtype=jnp.float32)

    # Deterministic synthetic parameters (shapes from MLP.__init__).
    w1 = jax.random.normal(k_w1, (D, H), dtype=jnp.float32) * 0.1
    b1 = jax.random.normal(k_b1, (H,), dtype=jnp.float32) * 0.1
    w2 = jax.random.normal(k_w2, (H, O), dtype=jnp.float32) * 0.1
    b2 = jax.random.normal(k_b2, (O,), dtype=jnp.float32) * 0.1
    bn_gamma = jnp.ones((H,), jnp.float32)
    bn_beta = jnp.zeros((H,), jnp.float32)
    bn_mean = jax.random.normal(k_m, (H,), dtype=jnp.float32) * 0.05
    bn_var = jnp.abs(jax.random.normal(k_v, (H,), dtype=jnp.float32)) * 0.1 + 1.0

    # One-time (model-load) folding + padding — NOT in the per-forward hot path.
    params, out_dim = prepare_reg_head_params(
        w1, b1, bn_gamma, bn_beta, bn_mean, bn_var, w2, b2)
    params = jax.tree_util.tree_map(jax.block_until_ready, params)

    ref_fn = lambda x: reg_head_ref(x, w1, b1, bn_gamma, bn_beta, bn_mean, bn_var,
                                    w2, b2)

    # Full-batch case.
    out = jax.block_until_ready(reg_head_pallas(reg_token, params, out_dim=out_dim))
    ref = ref_fn(reg_token)
    assert out.shape == (B, O), out.shape
    # bf16 MXU operands with f32 accumulation -> loosened tolerance.
    assert jnp.allclose(out, ref, atol=5e-3, rtol=5e-3), float(
        jnp.max(jnp.abs(out - ref)))

    # Non-sublane-multiple batch exercises the partial-block path (no jnp.pad).
    B2 = 5
    x2 = reg_token[:B2]
    out2 = jax.block_until_ready(reg_head_pallas(x2, params, out_dim=out_dim))
    ref2 = ref_fn(x2)
    assert out2.shape == (B2, O), out2.shape
    assert jnp.allclose(out2, ref2, atol=5e-3, rtol=5e-3), float(
        jnp.max(jnp.abs(out2 - ref2)))

    print("KERNEL_OK")
</pallas_src>

<mosaic_0001>
module attributes {stable_mosaic.version = 11 : i64} {
  func.func @_reg_head_kernel(%arg0: i32, %arg1: memref<8x32xf32, #tpu.memory_space<vmem>>, %arg2: memref<32x128xbf16, #tpu.memory_space<vmem>>, %arg3: memref<1x128xf32, #tpu.memory_space<vmem>>, %arg4: memref<128x128xbf16, #tpu.memory_space<vmem>>, %arg5: memref<1x4xf32, #tpu.memory_space<vmem>>, %arg6: memref<8x4xf32, #tpu.memory_space<vmem>>) attributes {dimension_semantics = [#tpu.dimension_semantics<parallel>], iteration_bounds = array<i64: 1>, scalar_prefetch = 0 : i64, scratch_operands = 0 : i64, tpu.core_type = #tpu.core_type<tc>, window_params = [{transform_indices = @transform_0, window_bounds = array<i64: 8, 32>}, {pipeline_mode = #tpu.pipeline_mode<synchronous>, transform_indices = @transform_1, window_bounds = array<i64: 32, 128>}, {pipeline_mode = #tpu.pipeline_mode<synchronous>, transform_indices = @transform_2, window_bounds = array<i64: 1, 128>}, {pipeline_mode = #tpu.pipeline_mode<synchronous>, transform_indices = @transform_3, window_bounds = array<i64: 128, 128>}, {pipeline_mode = #tpu.pipeline_mode<synchronous>, transform_indices = @transform_4, window_bounds = array<i64: 1, 4>}, {transform_indices = @transform_5, window_bounds = array<i64: 8, 4>}]} {
    %c0 = arith.constant 0 : index
    %c0_0 = arith.constant 0 : index
    %0 = vector.load %arg1[%c0, %c0_0] : memref<8x32xf32, #tpu.memory_space<vmem>>, vector<8x32xf32>
    %1 = arith.truncf %0 : vector<8x32xf32> to vector<8x32xbf16>
    %c0_1 = arith.constant 0 : index
    %c0_2 = arith.constant 0 : index
    %2 = vector.load %arg2[%c0_1, %c0_2] : memref<32x128xbf16, #tpu.memory_space<vmem>>, vector<32x128xbf16>
    %cst = arith.constant dense<0.000000e+00> : vector<8x128xf32>
    %3 = tpu.matmul %1, %2, %cst {dimension_numbers = #tpu.dot_dimension_numbers<[1], [0], [0], [1], [0, 0, 1, 1], [], []>} : vector<8x32xbf16>, vector<32x128xbf16>, vector<8x128xf32> -> vector<8x128xf32>
    %c0_3 = arith.constant 0 : index
    %c0_4 = arith.constant 0 : index
    %4 = vector.load %arg3[%c0_3, %c0_4] : memref<1x128xf32, #tpu.memory_space<vmem>>, vector<1x128xf32>
    %5 = vector.broadcast %4 : vector<1x128xf32> to vector<8x128xf32>
    %6 = arith.addf %3, %5 : vector<8x128xf32>
    %cst_5 = arith.constant 0.000000e+00 : f32
    %7 = vector.broadcast %cst_5 : f32 to vector<8x128xf32>
    %8 = arith.maximumf %6, %7 : vector<8x128xf32>
    %9 = arith.truncf %8 : vector<8x128xf32> to vector<8x128xbf16>
    %c0_6 = arith.constant 0 : index
    %c0_7 = arith.constant 0 : index
    %10 = vector.load %arg4[%c0_6, %c0_7] : memref<128x128xbf16, #tpu.memory_space<vmem>>, vector<128x128xbf16>
    %cst_8 = arith.constant dense<0.000000e+00> : vector<8x128xf32>
    %11 = tpu.matmul %9, %10, %cst_8 {dimension_numbers = #tpu.dot_dimension_numbers<[1], [0], [0], [1], [0, 0, 1, 1], [], []>} : vector<8x128xbf16>, vector<128x128xbf16>, vector<8x128xf32> -> vector<8x128xf32>
    %12 = vector.extract_strided_slice %11 {offsets = [0, 0], sizes = [8, 4], strides = [1, 1]} : vector<8x128xf32> to vector<8x4xf32>
    %c0_9 = arith.constant 0 : index
    %c0_10 = arith.constant 0 : index
    %13 = vector.load %arg5[%c0_9, %c0_10] : memref<1x4xf32, #tpu.memory_space<vmem>>, vector<1x4xf32>
    %14 = vector.broadcast %13 : vector<1x4xf32> to vector<8x4xf32>
    %15 = arith.addf %12, %14 : vector<8x4xf32>
    %16 = arith.negf %15 : vector<8x4xf32>
    %17 = math.exp %16 : vector<8x4xf32>
    %cst_11 = arith.constant 1.000000e+00 : f32
    %18 = vector.broadcast %cst_11 : f32 to vector<8x4xf32>
    %19 = arith.addf %18, %17 : vector<8x4xf32>
    %20 = arith.divf %18, %19 : vector<8x4xf32>
    %c0_12 = arith.constant 0 : index
    %c0_13 = arith.constant 0 : index
    %21 = vector.load %arg6[%c0_12, %c0_13] : memref<8x4xf32, #tpu.memory_space<vmem>>, vector<8x4xf32>
    tpu.vector_store %arg6[%c0_12, %c0_13], %20 {strides = array<i32>} : memref<8x4xf32, #tpu.memory_space<vmem>>, vector<8x4xf32>,
    return
  }
  func.func @transform_0(%arg0: i32) -> (i32, i32) {
    %c0_i32 = arith.constant 0 : i32
    %c0_i32_0 = arith.constant 0 : i32
    return %arg0, %c0_i32 : i32, i32
  }
  func.func @transform_1(%arg0: i32) -> (i32, i32) {
    %c0_i32 = arith.constant 0 : i32
    %c0_i32_0 = arith.constant 0 : i32
    %c0_i32_1 = arith.constant 0 : i32
    return %c0_i32, %c0_i32_0 : i32, i32
  }
  func.func @transform_2(%arg0: i32) -> (i32, i32) {
    %c0_i32 = arith.constant 0 : i32
    %c0_i32_0 = arith.constant 0 : i32
    %c0_i32_1 = arith.constant 0 : i32
    return %c0_i32, %c0_i32_0 : i32, i32
  }
  func.func @transform_3(%arg0: i32) -> (i32, i32) {
    %c0_i32 = arith.constant 0 : i32
    %c0_i32_0 = arith.constant 0 : i32
    %c0_i32_1 = arith.constant 0 : i32
    return %c0_i32, %c0_i32_0 : i32, i32
  }
  func.func @transform_4(%arg0: i32) -> (i32, i32) {
    %c0_i32 = arith.constant 0 : i32
    %c0_i32_0 = arith.constant 0 : i32
    %c0_i32_1 = arith.constant 0 : i32
    return %c0_i32, %c0_i32_0 : i32, i32
  }
  func.func @transform_5(%arg0: i32) -> (i32, i32) {
    %c0_i32 = arith.constant 0 : i32
    %c0_i32_0 = arith.constant 0 : i32
    return %arg0, %c0_i32 : i32, i32
  }
}

</mosaic_0001>

<llo_original>
// kernel: reg_head_pallas.1
$region0: #{reg_head_pallas.1}
  #allocation0 [shape = 'u32[]', space=smem, size = 0x4, offset = 0x4, fixed_abs, tag = 'smem constant byte address 0x4 - core index']
  #allocation1 [shape = 'u32[144,128]{1,0:T(1,128)}', space=vmem, size = 0x12000, scoped, tag = 'internal scratch']
  %s0 = inlined_call_operand.hbm [shape: f32[8,32], index: 0, kind: input, shape index: {}]
  %s1 = inlined_call_operand.hbm [shape: bf16[32,128], index: 1, kind: input, shape index: {}]
  %s2 = inlined_call_operand.vmem [shape: f32[1,128], index: 2, kind: input, shape index: {}]
  %s3 = inlined_call_operand.hbm [shape: bf16[128,128], index: 3, kind: input, shape index: {}]
  %s4 = inlined_call_operand.vmem [shape: f32[1,4], index: 4, kind: input, shape index: {}]
  %s5 = inlined_call_operand.vmem [shape: f32[8,4], index: 5, kind: output, shape index: {}]
  %s6 = sld [smem:[#allocation0]]
  $region42: #{reg_head_pallas.1} parent=0
    _
  %s8 = ssub.s32 1, %s6
  %s9 = scalar_select 0, %s8, %s6
  $region1: #{reg_head_pallas.1} parent=0
    #allocation2 [shape = 'u8[4096]{0}', space=vmem, size = 0x1000, scoped, tag = 'input window, operand 0, single buffered']
    #allocation3 [shape = 's32[1]{0}', space=sflag, size = 0x4, scoped, tag = 'scoped memory for reg_head_pallas.1']
    #allocation4 [shape = 'u8[8192]{0}', space=vmem, size = 0x2000, scoped, tag = 'input window, operand 1, single buffered']
    #allocation5 [shape = 's32[1]{0}', space=sflag, size = 0x4, scoped, tag = 'scoped memory for reg_head_pallas.1']
    #allocation6 [shape = 'u8[32768]{0}', space=vmem, size = 0x8000, scoped, tag = 'input window, operand 3, single buffered']
    %10 = vsyncpa [#allocation3], 0
    %11 = vsyncpa [#allocation5], 0
    // Predicated region
    $region2: #{reg_head_pallas.1} parent=1 // pred_check
      _
    $region3: #{reg_head_pallas.1} parent=1 // pred_check_branch
      %13 = sbr.rel (0) target = $region5
    $region4: #{reg_head_pallas.1} parent=1 // pred_region
      %s15 = ssub.s32 128, 128
      %16 = vsyncadd [#allocation3], %s15
      %s18 = sshll.u32 [#allocation2], 4
      %s19 = int_to_ptr.vmem [resolvable:$true] %s18
      %21 = dma.hbm_to_vmem [thread:$0]  %s0, 128, %s19, [#allocation3]
    $region5: #{reg_head_pallas.1} parent=1 // pred_fallthru
      _
    // Predicated region
    $region6: #{reg_head_pallas.1} parent=1 // pred_check
      _
    $region7: #{reg_head_pallas.1} parent=1 // pred_check_branch
      %23 = sbr.rel (0) target = $region9
    $region8: #{reg_head_pallas.1} parent=1 // pred_region
      %s25 = ssub.s32 256, 256
      %26 = vsyncadd [#allocation5], %s25
      %s27 = sshll.u32 [#allocation4], 4
      %s28 = int_to_ptr.vmem [resolvable:$true] %s27
      %33 = dma.hbm_to_vmem [thread:$0]  %s1, 256, %s28, [#allocation5], 64, 64, 4
    $region9: #{reg_head_pallas.1} parent=1 // pred_fallthru
      _
    // Predicated region
    $region10: #{reg_head_pallas.1} parent=1 // pred_check
      _
    $region11: #{reg_head_pallas.1} parent=1 // pred_check_branch
      %35 = sbr.rel (0) target = $region13
    $region12: #{reg_head_pallas.1} parent=1 // pred_region
      _
    $region13: #{reg_head_pallas.1} parent=1 // pred_fallthru
      _
    // Predicated region
    $region14: #{reg_head_pallas.1} parent=1 // pred_check
      _
    $region15: #{reg_head_pallas.1} parent=1 // pred_check_branch
      %37 = sbr.rel (0) target = $region17
    $region16: #{reg_head_pallas.1} parent=1 // pred_region
      %s39 = ssub.s32 1024, 1024
      %40 = vsyncadd [#allocation5], %s39
      %s41 = sshll.u32 [#allocation6], 4
      %s42 = int_to_ptr.vmem [resolvable:$true] %s41
      %47 = dma.hbm_to_vmem [thread:$0]  %s3, 1024, %s42, [#allocation5], 64, 64, 4
    $region17: #{reg_head_pallas.1} parent=1 // pred_fallthru
      _
    // Predicated region
    $region18: #{reg_head_pallas.1} parent=1 // pred_check
      _
    $region19: #{reg_head_pallas.1} parent=1 // pred_check_branch
      %49 = sbr.rel (0) target = $region21
    $region20: #{reg_head_pallas.1} parent=1 // pred_region
      _
    $region21: #{reg_head_pallas.1} parent=1 // pred_fallthru
      _
    // Predicated region
    $region22: #{reg_head_pallas.1} parent=1 // pred_check
      _
    $region23: #{reg_head_pallas.1} parent=1 // pred_check_branch
      %51 = sbr.rel (0) target = $region25
    $region24: #{reg_head_pallas.1} parent=1 // pred_region
      %52 = dma.done [#allocation3], 128
    $region25: #{reg_head_pallas.1} parent=1 // pred_fallthru
      _
    // Predicated region
    $region26: #{reg_head_pallas.1} parent=1 // pred_check
      _
    $region27: #{reg_head_pallas.1} parent=1 // pred_check_branch
      %54 = sbr.rel (0) target = $region29
    $region28: #{reg_head_pallas.1} parent=1 // pred_region
      %55 = dma.done [#allocation5], 256
    $region29: #{reg_head_pallas.1} parent=1 // pred_fallthru
      _
    // Predicated region
    $region30: #{reg_head_pallas.1} parent=1 // pred_check
      _
    $region31: #{reg_head_pallas.1} parent=1 // pred_check_branch
      %57 = sbr.rel (0) target = $region33
    $region32: #{reg_head_pallas.1} parent=1 // pred_region
      %58 = dma.done [#allocation5], 1024
    $region33: #{reg_head_pallas.1} parent=1 // pred_fallthru
      _
    %v60 = vld [vmem:[#allocation2] sm:$0xff]
    %v61 = vpack.c.bf16 %v60, %v60
    %v62 = vld [vmem:[#allocation4] sm:$0xf]
    %v63 = vld [vmem:[#allocation4 + $0x4] sm:$0xf]
    %v64 = vld [vmem:[#allocation4 + $0x8] sm:$0xf]
    %v65 = vld [vmem:[#allocation4 + $0xc] sm:$0xf]
    %v66 = vld [vmem:[%s2] sm:$0x1]
    %v68 = vlaneseq
    %v69 = vshrl.u32 %v68, 7
    %v70 = vsub.s32 0, %v69
    %v71 = vrot.slane %v66, %v70
    %v77 = vunpack.c.l.b16 %v62
    %v78 = vunpack.c.l.b16 %v63
    %v79 = vunpack.c.l.b16 %v64
    %v80 = vunpack.c.l.b16 %v65
    %v81 = vpack.c.b16 %v78, %v77
    %v82 = vpack.c.b16 %v80, %v79
    %vm85 = vcmask 261120
    %v87 = vsel %vm85, %v61, 0
    %89 = vmatprep.subr.bf16.mxu0 0
    %90 = vmatpush1.bf16.msra.mxu0 %v81
    %91 = vmatprep.subr.bf16.mxu0 0
    %92 = vmatpush1.bf16.msra.mxu0 %v82
    %93 = vmatprep.subr.bf16.mxu0 0
    %94 = vmatpush1.bf16.msra.mxu0 0
    %95 = vmatprep.subr.bf16.mxu0 0
    %96 = vmatpush1.bf16.msra.mxu0 0
    %97 = vmatprep.subr.bf16.mxu0 0
    %98 = vmatpush1.bf16.msra.mxu0 0
    %99 = vmatprep.subr.bf16.mxu0 0
    %100 = vmatpush1.bf16.msra.mxu0 0
    %101 = vmatprep.subr.bf16.mxu0 0
    %102 = vmatpush1.bf16.msra.mxu0 0
    %103 = vmatprep.subr.bf16.mxu0 0
    %104 = vmatpush1.bf16.msra.mxu0 0
    %105 = vmatprep.subr.bf16.mxu0 0
    %106 = vmatpush1.bf16.msra.mxu0 0
    %107 = vmatprep.subr.bf16.mxu0 0
    %108 = vmatpush1.bf16.msra.mxu0 0
    %109 = vmatprep.subr.bf16.mxu0 0
    %110 = vmatpush1.bf16.msra.mxu0 0
    %111 = vmatprep.subr.bf16.mxu0 0
    %112 = vmatpush1.bf16.msra.mxu0 0
    %113 = vmatprep.subr.bf16.mxu0 0
    %114 = vmatpush1.bf16.msra.mxu0 0
    %115 = vmatprep.subr.bf16.mxu0 0
    %116 = vmatpush1.bf16.msra.mxu0 0
    %117 = vmatprep.subr.bf16.mxu0 0
    %118 = vmatpush1.bf16.msra.mxu0 0
    %119 = vmatprep.subr.bf16.mxu0 0
    %120 = vmatpush1.bf16.msra.mxu0 0
    %121 = vmatprep.mubr.bf16.mxu0 0
    %122 = vmatmul.mubr.bf16.gmra.mrb[0].mxu0 %v87
    %v123 = vpop.f32.mrb[0].mxu0
    %v124 = vadd.f32 %v71, %v123
    %v125 = vpop.f32.mrb[0].mxu0
    %v126 = vpop.f32.mrb[0].mxu0
    %v127 = vpop.f32.mrb[0].mxu0
    %128 = vdwg.mxu0
    %v129 = vmax.f32 %v124, 0.0
    %v130 = vpack.c.bf16 %v129, %v129
    %v131 = vld [vmem:[#allocation6] sm:$0xf]
    %v132 = vld [vmem:[#allocation6 + $0x4] sm:$0xf]
    %v133 = vld [vmem:[#allocation6 + $0x8] sm:$0xf]
    %v134 = vld [vmem:[#allocation6 + $0xc] sm:$0xf]
    %v135 = vld [vmem:[#allocation6 + $0x10] sm:$0xf]
    %v136 = vld [vmem:[#allocation6 + $0x14] sm:$0xf]
    %v137 = vld [vmem:[#allocation6 + $0x18] sm:$0xf]
    %v138 = vld [vmem:[#allocation6 + $0x1c] sm:$0xf]
    %v139 = vld [vmem:[#allocation6 + $0x20] sm:$0xf]
    %v140 = vld [vmem:[#allocation6 + $0x24] sm:$0xf]
    %v141 = vld [vmem:[#allocation6 + $0x28] sm:$0xf]
    %v142 = vld [vmem:[#allocation6 + $0x2c] sm:$0xf]
    %v143 = vld [vmem:[#allocation6 + $0x30] sm:$0xf]
    %v144 = vld [vmem:[#allocation6 + $0x34] sm:$0xf]
    %v145 = vld [vmem:[#allocation6 + $0x38] sm:$0xf]
    %v146 = vld [vmem:[#allocation6 + $0x3c] sm:$0xf]
    %v163 = vunpack.c.l.b16 %v131
    %v164 = vunpack.c.l.b16 %v132
    %v165 = vunpack.c.l.b16 %v133
    %v166 = vunpack.c.l.b16 %v134
    %v167 = vunpack.c.l.b16 %v135
    %v168 = vunpack.c.l.b16 %v136
    %v169 = vunpack.c.l.b16 %v137
    %v170 = vunpack.c.l.b16 %v138
    %v171 = vunpack.c.l.b16 %v139
    %v172 = vunpack.c.l.b16 %v140
    %v173 = vunpack.c.l.b16 %v141
    %v174 = vunpack.c.l.b16 %v142
    %v175 = vunpack.c.l.b16 %v143
    %v176 = vunpack.c.l.b16 %v144
    %v177 = vunpack.c.l.b16 %v145
    %v178 = vunpack.c.l.b16 %v146
    %v179 = vpack.c.b16 %v164, %v163
    %v180 = vpack.c.b16 %v166, %v165
    %v181 = vpack.c.b16 %v168, %v167
    %v182 = vpack.c.b16 %v170, %v169
    %v183 = vpack.c.b16 %v172, %v171
    %v184 = vpack.c.b16 %v174, %v173
    %v185 = vpack.c.b16 %v176, %v175
    %v186 = vpack.c.b16 %v178, %v177
    %195 = vmatprep.subr.bf16.mxu0 0
    %196 = vmatpush1.bf16.msra.mxu0 %v179
    %197 = vmatprep.subr.bf16.mxu0 0
    %198 = vmatpush1.bf16.msra.mxu0 %v180
    %199 = vmatprep.subr.bf16.mxu0 0
    %200 = vmatpush1.bf16.msra.mxu0 %v181
    %201 = vmatprep.subr.bf16.mxu0 0
    %202 = vmatpush1.bf16.msra.mxu0 %v182
    %203 = vmatprep.subr.bf16.mxu0 0
    %204 = vmatpush1.bf16.msra.mxu0 %v183
    %205 = vmatprep.subr.bf16.mxu0 0
    %206 = vmatpush1.bf16.msra.mxu0 %v184
    %207 = vmatprep.subr.bf16.mxu0 0
    %208 = vmatpush1.bf16.msra.mxu0 %v185
    %209 = vmatprep.subr.bf16.mxu0 0
    %210 = vmatpush1.bf16.msra.mxu0 %v186
    %211 = vmatprep.subr.bf16.mxu0 0
    %212 = vmatpush1.bf16.msra.mxu0 0
    %213 = vmatprep.subr.bf16.mxu0 0
    %214 = vmatpush1.bf16.msra.mxu0 0
    %215 = vmatprep.subr.bf16.mxu0 0
    %216 = vmatpush1.bf16.msra.mxu0 0
    %217 = vmatprep.subr.bf16.mxu0 0
    %218 = vmatpush1.bf16.msra.mxu0 0
    %219 = vmatprep.subr.bf16.mxu0 0
    %220 = vmatpush1.bf16.msra.mxu0 0
    %221 = vmatprep.subr.bf16.mxu0 0
    %222 = vmatpush1.bf16.msra.mxu0 0
    %223 = vmatprep.subr.bf16.mxu0 0
    %224 = vmatpush1.bf16.msra.mxu0 0
    %225 = vmatprep.subr.bf16.mxu0 0
    %226 = vmatpush1.bf16.msra.mxu0 0
    %227 = vmatprep.mubr.bf16.mxu0 0
    %228 = vmatmul.mubr.bf16.gmra.mrb[0].mxu0 %v130
    %v229 = vpop.f32.mrb[0].mxu0
    %v230 = vadd.f32 0.0, %v229
    %v231 = vpop.f32.mrb[0].mxu0
    %v232 = vpop.f32.mrb[0].mxu0
    %v233 = vpop.f32.mrb[0].mxu0
    %234 = vdwg.mxu0
    %v235 = vld [vmem:[%s4] sm:$0x1]
    %v237 = vlaneseq
    %v238 = vshrl.u32 %v237, 7
    %v239 = vsub.s32 0, %v238
    %v240 = vrot.slane %v235, %v239
    %v242 = vadd.f32 %v230, %v240
    %v243 = vxor.u32 %v242, 2147483648
    %v244 = vmul.f32 %v243, 1.442695
    %v245 = vpow.pop %v244
    %v246 = vadd.f32 %v245, 1.0
    %v247 = vrcp.pop %v246
    %v248 = vmul.f32 1.0, %v247
    %vm249 = vcmask 31744
    %250 = vst.msk [vmem:[%s5] sm:$0xff] %vm249, %v248
    // Predicated region
    $region34: #{reg_head_pallas.1} parent=1 // pred_check
      _
    $region35: #{reg_head_pallas.1} parent=1 // pred_check_branch
      %252 = sbr.rel (0) target = $region37
    $region36: #{reg_head_pallas.1} parent=1 // pred_region
      _
    $region37: #{reg_head_pallas.1} parent=1 // pred_fallthru
      _
    // Predicated region
    $region38: #{reg_head_pallas.1} parent=1 // pred_check
      _
    $region39: #{reg_head_pallas.1} parent=1 // pred_check_branch
      %254 = sbr.rel (0) target = $region41
    $region40: #{reg_head_pallas.1} parent=1 // pred_region
      _
    $region41: #{reg_head_pallas.1} parent=1 // pred_fallthru
      _
    %255 = vsyncpa [#allocation3], 1
    %256 = vsyncpa [#allocation5], 1

</llo_original>
